<compile_context>
chip_gen: v7x
topology: tpu7x:2x2x1
jax: 0.10.0
libtpu: 0.0.40
codegen_flags: <defaults>
</compile_context>

<pallas_src>
import math

import jax
import jax.numpy as jnp
from jax.experimental import pallas as pl
from jax.experimental.pallas import tpu as pltpu

# ----------------------------- hyper-parameters ------------------------------
S = 30.0        # args.s
M = 4           # args.m (forward uses the exact cos(4*theta) Chebyshev form)
B = 8           # batch
F = 64          # raw input feature dim (input to the embedding "model")
E = 32          # args.n_embed
K = 128         # args.n_keyword

_EPS = 1e-12    # F.normalize default eps


def _round_up(a, m):
    return ((a + m - 1) // m) * m


def sphereface_kernel(y_ref, x_ref, wembt_ref, wnt_ref, out_ref):
    # Embedding backbone: (tb, F) @ (F, E) -> (tb, E).
    # bf16 MXU feed (weights arrive pre-transposed + pre-cast; x cast on VPU),
    # f32 accumulation.
    x = x_ref[...].astype(jnp.bfloat16)                      # (tb, F)
    emb = jnp.dot(x, wembt_ref[...],
                  preferred_element_type=jnp.float32)        # (tb, E) f32

    # F.normalize(x): x * rsqrt(max(||x||^2, eps^2)) == x / max(||x||, eps)
    x_ss = jnp.sum(emb * emb, axis=-1, keepdims=True)        # (tb, 1)
    x_n = emb * jax.lax.rsqrt(jnp.maximum(x_ss, _EPS * _EPS))

    # Cosine logits against pre-normalized prototypes: (tb, E) @ (E, K).
    # Kept f32: bf16 rounding here would be amplified x16 by T_4 and x30 by s.
    logits = jnp.dot(x_n, wnt_ref[...],
                     preferred_element_type=jnp.float32)     # (tb, K)

    # cos(m*theta) with m=4:  cos(4*acos(c)) == 8c^4 - 8c^2 + 1  (exact, T_4)
    c = jnp.clip(logits, -1.0 + 1e-7, 1.0 - 1e-7)
    c2 = c * c
    target_logits = (8.0 * c2 - 8.0) * c2 + 1.0

    # one_hot.scatter_(1, y, 1) + blend  ==  single select on (col == y)
    col = jax.lax.broadcasted_iota(jnp.int32, logits.shape, 1)   # (tb, K)
    out_ref[...] = jnp.where(col == y_ref[...], target_logits, logits) * S


def prepare_sphereface_params(w_emb, w):
    """One-time weight prep (call OUTSIDE the per-forward path for static params).

    - transpose both weights so the in-kernel matmuls are plain (M,K)@(K,N)
      MXU feeds with no in-kernel XLU transpose,
    - cast the embedding weight to bf16 (MXU operand dtype),
    - normalize the SphereFace prototypes once: F.normalize(W) is
      batch-independent, so doing it per batch tile inside the kernel was
      recomputed VPU/EUP work.
    """
    w_emb_t = jnp.asarray(w_emb, jnp.float32).T.astype(jnp.bfloat16)    # (F, E)
    w_f32 = jnp.asarray(w, jnp.float32)                                 # (K, E)
    w_ss = jnp.sum(w_f32 * w_f32, axis=-1, keepdims=True)               # (K, 1)
    w_n_t = (w_f32 * jax.lax.rsqrt(jnp.maximum(w_ss, _EPS * _EPS))).T   # (E, K)
    return w_emb_t, w_n_t


def sphereface_forward(x, y, w_emb_t, w_n_t, *, block_b=1024, min_batch_tiles=2):
    b, f = x.shape
    e, k = w_n_t.shape

    # ---- batch tiling --------------------------------------------------------
    # Big tiles amortize the ~0.35us/grid-step overhead (per-step VMEM even at
    # tb=1024 is ~1.5 MiB at these F/K), but split into >= min_batch_tiles
    # tiles once there is enough work so the "parallel" axis shards across both
    # TensorCores on v7x.
    b8 = _round_up(b, 8)
    grid_b = max(pl.cdiv(b8, block_b), min_batch_tiles if b8 >= 16 else 1)
    tb = _round_up(pl.cdiv(b8, grid_b), 8)
    b_pad = tb * grid_b

    # ---- inputs: no full padded copy; pad only a ragged tail -----------------
    x_p = x if x.dtype == jnp.float32 else x.astype(jnp.float32)
    y_col = y.astype(jnp.int32).reshape(b, 1)
    if b_pad != b:
        pad = b_pad - b
        # zero x rows -> x_ss == 0 -> 0 * rsqrt(eps^2) == 0 -> finite logits;
        # y = -1 never matches the iota, so padded rows take the plain branch
        # and are sliced off below.
        x_p = jnp.pad(x_p, ((0, pad), (0, 0)))
        y_col = jnp.pad(y_col, ((0, pad), (0, 0)), constant_values=-1)

    # ---- cost / VMEM budgeting -----------------------------------------------
    # Grid-invariant weight blocks (constant index_map) are DMA'd once.
    cost = pl.CostEstimate(
        flops=2 * b_pad * f * e + 2 * b_pad * e * k + 12 * b_pad * k,
        transcendentals=b_pad,                         # one rsqrt per row
        bytes_accessed=(b_pad * f * 4 + b_pad * 4      # x, y in
                        + b_pad * k * 4                # out
                        + f * e * 2 + e * k * 4),      # weights, once
    )
    # Double-buffered batch-tiled blocks + resident weights (+ headroom);
    # never below the v5e 16 MiB scoped default (only ever raise the limit).
    block_bytes = (2 * (tb * f * 4 + tb * 4 + tb * k * 4)
                   + 2 * (f * e * 2 + e * k * 4))
    vmem_limit = min(128 << 20, max(16 << 20, 2 * block_bytes + (2 << 20)))

    # TODO(synk): if K grows beyond the toy 128, add a K grid axis (lane-dense
    # tk, multiple of 128) and offset the in-kernel iota by program_id(1)*tk so
    # the resident (E,K) weight and (tb,K) out blocks stop scaling with K
    # (v7x has only 64 MiB physical VMEM).
    out = pl.pallas_call(
        sphereface_kernel,
        out_shape=jax.ShapeDtypeStruct((b_pad, k), jnp.float32),
        grid_spec=pltpu.PrefetchScalarGridSpec(
            num_scalar_prefetch=0,
            grid=(grid_b,),
            in_specs=[
                pl.BlockSpec((tb, 1), lambda i: (i, 0)),   # y (tiled over batch)
                pl.BlockSpec((tb, f), lambda i: (i, 0)),   # x (tiled over batch)
                pl.BlockSpec((f, e), lambda i: (0, 0)),    # W_emb^T (resident, bf16)
                pl.BlockSpec((e, k), lambda i: (0, 0)),    # normalize(W)^T (resident)
            ],
            out_specs=pl.BlockSpec((tb, k), lambda i: (i, 0)),
        ),
        compiler_params=pltpu.CompilerParams(
            dimension_semantics=("parallel",),
            vmem_limit_bytes=vmem_limit),
        cost_estimate=cost,
    )(y_col, x_p, w_emb_t, w_n_t)

    return out if b_pad == b else out[:b]


def sphereface_reference(x, y, w_emb, w, *, emb_bf16=False):
    """Pure-JAX reference mirroring the PyTorch forward.

    emb_bf16=True mirrors the kernel's intentional bf16 MXU feed on the
    embedding matmul (f32 accumulation) so the kernel can be checked at tight
    tolerance; emb_bf16=False is the full-f32 PyTorch-faithful reference.
    """
    if emb_bf16:
        emb = jnp.dot(x.astype(jnp.bfloat16), w_emb.T.astype(jnp.bfloat16),
                      preferred_element_type=jnp.float32)
    else:
        emb = jnp.dot(x, w_emb.T, precision=jax.lax.Precision.HIGHEST)
    x_n = emb / jnp.maximum(jnp.linalg.norm(emb, axis=-1, keepdims=True), _EPS)
    w_n = w / jnp.maximum(jnp.linalg.norm(w, axis=-1, keepdims=True), _EPS)
    logits = jnp.dot(x_n, w_n.T, precision=jax.lax.Precision.HIGHEST)
    theta = jnp.arccos(jnp.clip(logits, -1.0 + 1e-7, 1.0 - 1e-7))
    target = jnp.cos(float(M) * theta)
    one_hot = jax.nn.one_hot(y, w.shape[0], dtype=jnp.float32)
    return (logits * (1.0 - one_hot) + target * one_hot) * S


if __name__ == "__main__":
    key = jax.random.PRNGKey(0)
    kx, ky, kwe, kw = jax.random.split(key, 4)

    x = jax.random.normal(kx, (B, F), dtype=jnp.float32)
    y = jax.random.randint(ky, (B,), 0, K, dtype=jnp.int32)

    # TODO(synk): `self.embedding = model` is an arbitrary backbone in PyTorch;
    # it is modeled here as a deterministic linear projection F -> E.
    bound_emb = math.sqrt(6.0 / (F + E))                      # xavier-uniform-like
    w_emb = jax.random.uniform(kwe, (E, F), jnp.float32, -bound_emb, bound_emb)

    # nn.init.xavier_uniform_ on W (n_keyword, n_embed): fan_in=E, fan_out=K
    bound_w = math.sqrt(6.0 / (E + K))
    w = jax.random.uniform(kw, (K, E), jnp.float32, -bound_w, bound_w)

    # Static parameters: transpose / normalize / cast ONCE, outside the
    # per-forward path.
    w_emb_t, w_n_t = prepare_sphereface_params(w_emb, w)

    out = sphereface_forward(x, y, w_emb_t, w_n_t)
    out = jax.block_until_ready(out)
    assert out.shape == (B, K)

    # Tight check vs. a reference that matches the kernel's bf16 embedding
    # matmul feed (everything else f32).
    ref_matched = sphereface_reference(x, y, w_emb, w, emb_bf16=True)
    assert bool(jnp.allclose(out, ref_matched, atol=2e-2, rtol=1e-3))

    # Fidelity check vs. the full-f32 PyTorch-faithful reference; the only gap
    # is bf16 input rounding on the embedding matmul, amplified by T_4 and s.
    ref_f32 = sphereface_reference(x, y, w_emb, w)
    assert bool(jnp.allclose(out, ref_f32, atol=5e-1, rtol=1e-3))

    print("KERNEL_OK")
</pallas_src>

<mosaic_0001>
module attributes {stable_mosaic.version = 11 : i64} {
  func.func @sphereface_kernel(%arg0: i32, %arg1: memref<8x1xi32, #tpu.memory_space<vmem>>, %arg2: memref<8x64xf32, #tpu.memory_space<vmem>>, %arg3: memref<64x32xbf16, #tpu.memory_space<vmem>>, %arg4: memref<32x128xf32, #tpu.memory_space<vmem>>, %arg5: memref<8x128xf32, #tpu.memory_space<vmem>>) attributes {dimension_semantics = [#tpu.dimension_semantics<parallel>], iteration_bounds = array<i64: 1>, scalar_prefetch = 0 : i64, scratch_operands = 0 : i64, tpu.core_type = #tpu.core_type<tc>, window_params = [{transform_indices = @transform_0, window_bounds = array<i64: 8, 1>}, {transform_indices = @transform_1, window_bounds = array<i64: 8, 64>}, {pipeline_mode = #tpu.pipeline_mode<synchronous>, transform_indices = @transform_2, window_bounds = array<i64: 64, 32>}, {pipeline_mode = #tpu.pipeline_mode<synchronous>, transform_indices = @transform_3, window_bounds = array<i64: 32, 128>}, {transform_indices = @transform_4, window_bounds = array<i64: 8, 128>}]} {
    %c0 = arith.constant 0 : index
    %c0_0 = arith.constant 0 : index
    %0 = vector.load %arg2[%c0, %c0_0] : memref<8x64xf32, #tpu.memory_space<vmem>>, vector<8x64xf32>
    %1 = arith.truncf %0 : vector<8x64xf32> to vector<8x64xbf16>
    %c0_1 = arith.constant 0 : index
    %c0_2 = arith.constant 0 : index
    %2 = vector.load %arg3[%c0_1, %c0_2] : memref<64x32xbf16, #tpu.memory_space<vmem>>, vector<64x32xbf16>
    %cst = arith.constant dense<0.000000e+00> : vector<8x32xf32>
    %3 = tpu.matmul %1, %2, %cst {dimension_numbers = #tpu.dot_dimension_numbers<[1], [0], [0], [1], [0, 0, 1, 1], [], []>} : vector<8x64xbf16>, vector<64x32xbf16>, vector<8x32xf32> -> vector<8x32xf32>
    %4 = arith.mulf %3, %3 : vector<8x32xf32>
    %cst_3 = arith.constant dense<0.000000e+00> : vector<8xf32>
    %5 = vector.multi_reduction <add>, %4, %cst_3 [1] : vector<8x32xf32> to vector<8xf32>
    %6 = vector.shape_cast %5 : vector<8xf32> to vector<8x1xf32>
    %cst_4 = arith.constant 1.000000e-24 : f32
    %7 = vector.broadcast %cst_4 : f32 to vector<8x1xf32>
    %8 = arith.maximumf %6, %7 : vector<8x1xf32>
    %9 = math.rsqrt %8 : vector<8x1xf32>
    %10 = vector.broadcast %9 : vector<8x1xf32> to vector<8x32xf32>
    %11 = arith.mulf %3, %10 : vector<8x32xf32>
    %c0_5 = arith.constant 0 : index
    %c0_6 = arith.constant 0 : index
    %12 = vector.load %arg4[%c0_5, %c0_6] : memref<32x128xf32, #tpu.memory_space<vmem>>, vector<32x128xf32>
    %cst_7 = arith.constant dense<0.000000e+00> : vector<8x128xf32>
    %13 = tpu.matmul %11, %12, %cst_7 {dimension_numbers = #tpu.dot_dimension_numbers<[1], [0], [0], [1], [0, 0, 1, 1], [], []>} : vector<8x32xf32>, vector<32x128xf32>, vector<8x128xf32> -> vector<8x128xf32>
    %cst_8 = arith.constant -0.99999988 : f32
    %cst_9 = arith.constant 0.99999988 : f32
    %14 = vector.broadcast %cst_8 : f32 to vector<8x128xf32>
    %15 = arith.maximumf %14, %13 : vector<8x128xf32>
    %16 = vector.broadcast %cst_9 : f32 to vector<8x128xf32>
    %17 = arith.minimumf %16, %15 : vector<8x128xf32>
    %18 = arith.mulf %17, %17 : vector<8x128xf32>
    %cst_10 = arith.constant 8.000000e+00 : f32
    %19 = vector.broadcast %cst_10 : f32 to vector<8x128xf32>
    %20 = arith.mulf %19, %18 : vector<8x128xf32>
    %cst_11 = arith.constant 8.000000e+00 : f32
    %21 = vector.broadcast %cst_11 : f32 to vector<8x128xf32>
    %22 = arith.subf %20, %21 : vector<8x128xf32>
    %23 = arith.mulf %22, %18 : vector<8x128xf32>
    %cst_12 = arith.constant 1.000000e+00 : f32
    %24 = vector.broadcast %cst_12 : f32 to vector<8x128xf32>
    %25 = arith.addf %23, %24 : vector<8x128xf32>
    %26 = tpu.iota {dimensions = array<i32: 1>} : vector<8x128xi32>
    %c0_13 = arith.constant 0 : index
    %c0_14 = arith.constant 0 : index
    %27 = vector.load %arg1[%c0_13, %c0_14] : memref<8x1xi32, #tpu.memory_space<vmem>>, vector<8x1xi32>
    %28 = vector.broadcast %27 : vector<8x1xi32> to vector<8x128xi32>
    %29 = arith.cmpi eq, %26, %28 : vector<8x128xi32>
    %30 = arith.select %29, %25, %13 : vector<8x128xi1>, vector<8x128xf32>
    %cst_15 = arith.constant 3.000000e+01 : f32
    %31 = vector.broadcast %cst_15 : f32 to vector<8x128xf32>
    %32 = arith.mulf %30, %31 : vector<8x128xf32>
    %c0_16 = arith.constant 0 : index
    %c0_17 = arith.constant 0 : index
    %33 = vector.load %arg5[%c0_16, %c0_17] : memref<8x128xf32, #tpu.memory_space<vmem>>, vector<8x128xf32>
    tpu.vector_store %arg5[%c0_16, %c0_17], %32 {strides = array<i32>} : memref<8x128xf32, #tpu.memory_space<vmem>>, vector<8x128xf32>,
    return
  }
  func.func @transform_0(%arg0: i32) -> (i32, i32) {
    %c0_i32 = arith.constant 0 : i32
    %c0_i32_0 = arith.constant 0 : i32
    return %arg0, %c0_i32 : i32, i32
  }
  func.func @transform_1(%arg0: i32) -> (i32, i32) {
    %c0_i32 = arith.constant 0 : i32
    %c0_i32_0 = arith.constant 0 : i32
    return %arg0, %c0_i32 : i32, i32
  }
  func.func @transform_2(%arg0: i32) -> (i32, i32) {
    %c0_i32 = arith.constant 0 : i32
    %c0_i32_0 = arith.constant 0 : i32
    %c0_i32_1 = arith.constant 0 : i32
    return %c0_i32, %c0_i32_0 : i32, i32
  }
  func.func @transform_3(%arg0: i32) -> (i32, i32) {
    %c0_i32 = arith.constant 0 : i32
    %c0_i32_0 = arith.constant 0 : i32
    %c0_i32_1 = arith.constant 0 : i32
    return %c0_i32, %c0_i32_0 : i32, i32
  }
  func.func @transform_4(%arg0: i32) -> (i32, i32) {
    %c0_i32 = arith.constant 0 : i32
    %c0_i32_0 = arith.constant 0 : i32
    return %arg0, %c0_i32 : i32, i32
  }
}

</mosaic_0001>

<llo_original>
// kernel: tpu_custom_call.1
$region0: #{tpu_custom_call.1}
  #allocation0 [shape = 'u32[]', space=smem, size = 0x4, offset = 0x4, fixed_abs, tag = 'smem constant byte address 0x4 - core index']
  #allocation1 [shape = 'u32[144,128]{1,0:T(1,128)}', space=vmem, size = 0x12000, scoped, tag = 'internal scratch']
  %s0 = inlined_call_operand.vmem [shape: s32[8,1], index: 0, kind: input, shape index: {}]
  %s1 = inlined_call_operand.vmem [shape: f32[8,64], index: 1, kind: input, shape index: {}]
  %s2 = inlined_call_operand.vmem [shape: bf16[64,32], index: 2, kind: input, shape index: {}]
  %s3 = inlined_call_operand.vmem [shape: f32[32,128], index: 3, kind: input, shape index: {}]
  %s4 = inlined_call_operand.hbm [shape: f32[8,128], index: 4, kind: output, shape index: {}]
  %s5 = sld [smem:[#allocation0]]
  $region26: #{tpu_custom_call.1} parent=0
    _
  %s7 = ssub.s32 1, %s5
  %s8 = scalar_select 0, %s7, %s5
  $region1: #{tpu_custom_call.1} parent=0
    #allocation2 [shape = 'u8[4096]{0}', space=vmem, size = 0x1000, scoped, tag = 'output window, operand 0, single buffered']
    #allocation3 [shape = 's32[1]{0}', space=sflag, size = 0x4, scoped, tag = 'scoped memory for tpu_custom_call.1']
    %9 = vsyncpa [#allocation3], 0
    // Predicated region
    $region2: #{tpu_custom_call.1} parent=1 // pred_check
      _
    $region3: #{tpu_custom_call.1} parent=1 // pred_check_branch
      %11 = sbr.rel (0) target = $region5
    $region4: #{tpu_custom_call.1} parent=1 // pred_region
      _
    $region5: #{tpu_custom_call.1} parent=1 // pred_fallthru
      _
    // Predicated region
    $region6: #{tpu_custom_call.1} parent=1 // pred_check
      _
    $region7: #{tpu_custom_call.1} parent=1 // pred_check_branch
      %13 = sbr.rel (0) target = $region9
    $region8: #{tpu_custom_call.1} parent=1 // pred_region
      _
    $region9: #{tpu_custom_call.1} parent=1 // pred_fallthru
      _
    // Predicated region
    $region10: #{tpu_custom_call.1} parent=1 // pred_check
      _
    $region11: #{tpu_custom_call.1} parent=1 // pred_check_branch
      %15 = sbr.rel (0) target = $region13
    $region12: #{tpu_custom_call.1} parent=1 // pred_region
      _
    $region13: #{tpu_custom_call.1} parent=1 // pred_fallthru
      _
    // Predicated region
    $region14: #{tpu_custom_call.1} parent=1 // pred_check
      _
    $region15: #{tpu_custom_call.1} parent=1 // pred_check_branch
      %17 = sbr.rel (0) target = $region17
    $region16: #{tpu_custom_call.1} parent=1 // pred_region
      _
    $region17: #{tpu_custom_call.1} parent=1 // pred_fallthru
      _
    %v19 = vld [vmem:[%s1] sm:$0xff]
    %v20 = vpack.c.bf16 %v19, %v19
    %v21 = vld [vmem:[%s2] sm:$0xf]
    %v22 = vld [vmem:[%s2 + $0x4] sm:$0xf]
    %v23 = vld [vmem:[%s2 + $0x8] sm:$0xf]
    %v24 = vld [vmem:[%s2 + $0xc] sm:$0xf]
    %v25 = vld [vmem:[%s2 + $0x10] sm:$0xf]
    %v26 = vld [vmem:[%s2 + $0x14] sm:$0xf]
    %v27 = vld [vmem:[%s2 + $0x18] sm:$0xf]
    %v28 = vld [vmem:[%s2 + $0x1c] sm:$0xf]
    %v37 = vunpack.c.l.b16 %v21
    %v38 = vunpack.c.l.b16 %v22
    %v39 = vunpack.c.l.b16 %v23
    %v40 = vunpack.c.l.b16 %v24
    %v41 = vunpack.c.l.b16 %v25
    %v42 = vunpack.c.l.b16 %v26
    %v43 = vunpack.c.l.b16 %v27
    %v44 = vunpack.c.l.b16 %v28
    %v45 = vpack.c.b16 %v38, %v37
    %v46 = vpack.c.b16 %v40, %v39
    %v47 = vpack.c.b16 %v42, %v41
    %v48 = vpack.c.b16 %v44, %v43
    %vm53 = vcmask 523264
    %v55 = vsel %vm53, %v20, 0
    %57 = vmatprep.subr.bf16.mxu0 0
    %58 = vmatpush1.bf16.msra.mxu0 %v45
    %59 = vmatprep.subr.bf16.mxu0 0
    %60 = vmatpush1.bf16.msra.mxu0 %v46
    %61 = vmatprep.subr.bf16.mxu0 0
    %62 = vmatpush1.bf16.msra.mxu0 %v47
    %63 = vmatprep.subr.bf16.mxu0 0
    %64 = vmatpush1.bf16.msra.mxu0 %v48
    %65 = vmatprep.subr.bf16.mxu0 0
    %66 = vmatpush1.bf16.msra.mxu0 0
    %67 = vmatprep.subr.bf16.mxu0 0
    %68 = vmatpush1.bf16.msra.mxu0 0
    %69 = vmatprep.subr.bf16.mxu0 0
    %70 = vmatpush1.bf16.msra.mxu0 0
    %71 = vmatprep.subr.bf16.mxu0 0
    %72 = vmatpush1.bf16.msra.mxu0 0
    %73 = vmatprep.subr.bf16.mxu0 0
    %74 = vmatpush1.bf16.msra.mxu0 0
    %75 = vmatprep.subr.bf16.mxu0 0
    %76 = vmatpush1.bf16.msra.mxu0 0
    %77 = vmatprep.subr.bf16.mxu0 0
    %78 = vmatpush1.bf16.msra.mxu0 0
    %79 = vmatprep.subr.bf16.mxu0 0
    %80 = vmatpush1.bf16.msra.mxu0 0
    %81 = vmatprep.subr.bf16.mxu0 0
    %82 = vmatpush1.bf16.msra.mxu0 0
    %83 = vmatprep.subr.bf16.mxu0 0
    %84 = vmatpush1.bf16.msra.mxu0 0
    %85 = vmatprep.subr.bf16.mxu0 0
    %86 = vmatpush1.bf16.msra.mxu0 0
    %87 = vmatprep.subr.bf16.mxu0 0
    %88 = vmatpush1.bf16.msra.mxu0 0
    %89 = vmatprep.mubr.bf16.mxu0 0
    %90 = vmatmul.mubr.bf16.gmra.mrb[0].mxu0 %v55
    %v91 = vpop.f32.mrb[0].mxu0
    %v92 = vadd.f32 0.0, %v91
    %v93 = vpop.f32.mrb[0].mxu0
    %v94 = vpop.f32.mrb[0].mxu0
    %v95 = vpop.f32.mrb[0].mxu0
    %96 = vdwg.mxu0
    %v97 = vmul.f32 %v92, %v92
    %vm98 = vcmask 261120
    %v99 = vsel %vm98, %v97, 0.0
    %100 = vadd.xlane.f32.xlu0 %v99
    %v101 = vpop.xlane.xlu0 %100
    %v102 = vmax.f32 %v101, 1e-24
    %v103 = vrsqrt.pop %v102
    %v104 = vmul.f32 %v92, %v103
    %v105 = vld [vmem:[%s3] sm:$0xff]
    %v106 = vld [vmem:[%s3 + $0x8] sm:$0xff]
    %v107 = vld [vmem:[%s3 + $0x10] sm:$0xff]
    %v108 = vld [vmem:[%s3 + $0x18] sm:$0xff]
    %v110 = vsel %vm98, %v104, 0
    %112 = vmatprep.subr.mxu0 0.0
    %113 = vmatpush1.msra.mxu0 %v105
    %114 = vmatprep.subr.mxu0 0.0
    %115 = vmatpush1.msra.mxu0 %v106
    %116 = vmatprep.subr.mxu0 0.0
    %117 = vmatpush1.msra.mxu0 %v107
    %118 = vmatprep.subr.mxu0 0.0
    %119 = vmatpush1.msra.mxu0 %v108
    %120 = vmatprep.subr.mxu0 0.0
    %121 = vmatpush1.msra.mxu0 0.0
    %122 = vmatprep.subr.mxu0 0.0
    %123 = vmatpush1.msra.mxu0 0.0
    %124 = vmatprep.subr.mxu0 0.0
    %125 = vmatpush1.msra.mxu0 0.0
    %126 = vmatprep.subr.mxu0 0.0
    %127 = vmatpush1.msra.mxu0 0.0
    %128 = vmatprep.subr.mxu0 0.0
    %129 = vmatpush1.msra.mxu0 0.0
    %130 = vmatprep.subr.mxu0 0.0
    %131 = vmatpush1.msra.mxu0 0.0
    %132 = vmatprep.subr.mxu0 0.0
    %133 = vmatpush1.msra.mxu0 0.0
    %134 = vmatprep.subr.mxu0 0.0
    %135 = vmatpush1.msra.mxu0 0.0
    %136 = vmatprep.subr.mxu0 0.0
    %137 = vmatpush1.msra.mxu0 0.0
    %138 = vmatprep.subr.mxu0 0.0
    %139 = vmatpush1.msra.mxu0 0.0
    %140 = vmatprep.subr.mxu0 0.0
    %141 = vmatpush1.msra.mxu0 0.0
    %142 = vmatprep.subr.mxu0 0.0
    %143 = vmatpush1.msra.mxu0 0.0
    %144 = vmatprep.subr.mxu0 0.0
    %145 = vmatpush1.msra.mxu0 0.0
    %146 = vmatprep.subr.mxu0 0.0
    %147 = vmatpush1.msra.mxu0 0.0
    %148 = vmatprep.subr.mxu0 0.0
    %149 = vmatpush1.msra.mxu0 0.0
    %150 = vmatprep.subr.mxu0 0.0
    %151 = vmatpush1.msra.mxu0 0.0
    %152 = vmatprep.subr.mxu0 0.0
    %153 = vmatpush1.msra.mxu0 0.0
    %154 = vmatprep.subr.mxu0 0.0
    %155 = vmatpush1.msra.mxu0 0.0
    %156 = vmatprep.subr.mxu0 0.0
    %157 = vmatpush1.msra.mxu0 0.0
    %158 = vmatprep.subr.mxu0 0.0
    %159 = vmatpush1.msra.mxu0 0.0
    %160 = vmatprep.subr.mxu0 0.0
    %161 = vmatpush1.msra.mxu0 0.0
    %162 = vmatprep.subr.mxu0 0.0
    %163 = vmatpush1.msra.mxu0 0.0
    %164 = vmatprep.subr.mxu0 0.0
    %165 = vmatpush1.msra.mxu0 0.0
    %166 = vmatprep.subr.mxu0 0.0
    %167 = vmatpush1.msra.mxu0 0.0
    %168 = vmatprep.subr.mxu0 0.0
    %169 = vmatpush1.msra.mxu0 0.0
    %170 = vmatprep.subr.mxu0 0.0
    %171 = vmatpush1.msra.mxu0 0.0
    %172 = vmatprep.subr.mxu0 0.0
    %173 = vmatpush1.msra.mxu0 0.0
    %174 = vmatprep.subr.mxu0 0.0
    %175 = vmatpush1.msra.mxu0 0.0
    %176 = vmatprep.mubr.f32.mxu0 0.0
    %177 = vmatmul.mubr.f32.gmra.mrb[0].mxu0 %v110
    %v178 = vpop.f32.mrb[0].mxu0
    %v179 = vadd.f32 0.0, %v178
    %v180 = vpop.f32.mrb[0].mxu0
    %181 = vdwg.mxu0
    %v182 = vmax.f32 %v179, -0.9999999
    %v183 = vmin.f32 %v182, 0.9999999
    %v184 = vmul.f32 %v183, %v183
    %v185 = vmul.f32 %v184, 8.0
    %v186 = vsub.f32 %v185, 8.0
    %v187 = vmul.f32 %v186, %v184
    %v188 = vadd.f32 %v187, 1.0
    %v189 = vlaneseq
    %v190 = vand.u32 %v189, 127
    %v191 = vld [vmem:[%s0] sm:$0xff]
    %192 = vset.pattern.permute.xlu0 0
    %193 = vperm.xlu0 %192, %v191
    %v194 = vpop.permute.xlu0 %193
    %vm195 = vcmp.eq.s32.totalorder %v190, %v194
    %v196 = vsel %vm195, %v188, %v179
    %v197 = vmul.f32 %v196, 30.0
    %198 = vst [vmem:[#allocation2] sm:$0xff] %v197
    // Predicated region
    $region18: #{tpu_custom_call.1} parent=1 // pred_check
      _
    $region19: #{tpu_custom_call.1} parent=1 // pred_check_branch
      %200 = sbr.rel (0) target = $region21
    $region20: #{tpu_custom_call.1} parent=1 // pred_region
      %s202 = ssub.s32 128, 128
      %203 = vsyncadd [#allocation3], %s202
      %s205 = sshll.u32 [#allocation2], 4
      %s206 = int_to_ptr.vmem [resolvable:$true] %s205
      %208 = dma.vmem_to_hbm [thread:$0]  %s206, 128, %s4, [#allocation3]
    $region21: #{tpu_custom_call.1} parent=1 // pred_fallthru
      _
    // Predicated region
    $region22: #{tpu_custom_call.1} parent=1 // pred_check
      _
    $region23: #{tpu_custom_call.1} parent=1 // pred_check_branch
      %210 = sbr.rel (0) target = $region25
    $region24: #{tpu_custom_call.1} parent=1 // pred_region
      %211 = dma.done [#allocation3], 128
    $region25: #{tpu_custom_call.1} parent=1 // pred_fallthru
      _
    %212 = vsyncpa [#allocation3], 1

</llo_original>
